<compile_context>
chip_gen: v7x
topology: tpu7x:2x2x1
jax: 0.10.0
libtpu: 0.0.40
codegen_flags: <defaults>
</compile_context>

<pallas_src>
import math

import jax
import jax.numpy as jnp
from jax.experimental import pallas as pl
from jax.experimental.pallas import tpu as pltpu

SHIFT = math.log(2.0)

_VMEM_BUDGET = 28 * 1024 * 1024      # conservative working-set budget (all gens)
_VMEM_LIMIT = 48 * 1024 * 1024       # scoped-VMEM request (< 64 MiB v7x physical)


def _round_up(v, m):
    return (v + m - 1) // m * m


def _gcl_kernel(adj_ref, xt_ref, xf_ref, w1_ref, b1_ref, w2_ref, b2_ref, o_ref):
    # adj row strip (TM, N_pad); upcast on the VPU so the MXU sees f32
    # (exact for 0/1 adjacency supplied in bf16/int-like dtypes).
    adj = adj_ref[...].astype(jnp.float32)

    # message passing: adj_strip @ x_full  -> (TM, F_pad)
    h = jnp.dot(adj, xf_ref[...], preferred_element_type=jnp.float32)

    # linear1 + shifted softplus
    h = jnp.dot(h, w1_ref[...], preferred_element_type=jnp.float32) + b1_ref[...]
    h = jnp.logaddexp(h, 0.0) - SHIFT

    # linear2 + shifted softplus
    h = jnp.dot(h, w2_ref[...], preferred_element_type=jnp.float32) + b2_ref[...]
    h = jnp.logaddexp(h, 0.0) - SHIFT

    # residual on this row tile
    o_ref[...] = xt_ref[...] + h


def _vmem_estimate(tm, n_pad, f_pad, adj_itemsize):
    stream = 2 * tm * n_pad * adj_itemsize        # adj strip, double-buffered
    stream += 2 * 2 * tm * f_pad * 4              # x row tile + out tile, double-buffered
    resident = 2 * n_pad * f_pad * 4              # full x
    resident += 2 * 2 * f_pad * f_pad * 4         # w1, w2
    resident += 2 * 2 * f_pad * 4                 # b1, b2
    work = 4 * tm * f_pad * 4                     # in-flight intermediates (rough)
    return stream + resident + work


def _pick_tm(n, f_pad, adj_itemsize):
    """Largest row-tile (multiple of 16, <= 1024) whose working set fits budget."""
    tm = min(1024, _round_up(n, 16))
    while tm > 16:
        n_pad = _round_up(n, tm)
        if _vmem_estimate(tm, n_pad, f_pad, adj_itemsize) <= _VMEM_BUDGET:
            break
        tm = max(16, (tm // 2) // 16 * 16)
    return tm


def graph_convolution_layer(x, e, adj, w1, b1, w2, b2):
    """x: (N, F) f32, adj: (N, N) any float dtype (0/1 -> bf16 is exact),
    w1/w2: (F, F) f32 stored pre-transposed as (in, out), b1/b2: (F,) f32.
    `e` is accepted but unused, matching the PyTorch forward."""
    del e
    N, F = x.shape
    assert adj.shape == (N, N), "adjacency must be (N, N)"
    assert w1.shape == (F, F) and w2.shape == (F, F), (
        "residual x + out requires in_features == out_features")
    assert b1.shape == (F,) and b2.shape == (F,)

    f_pad = _round_up(F, 128)                      # lane-dense feature axis
    adj_itemsize = jnp.dtype(adj.dtype).itemsize
    tm = _pick_tm(N, f_pad, adj_itemsize)
    n_pad = _round_up(N, tm)
    grid = (n_pad // tm,)

    # Zero-padding is numerically exact for this module: softplus(0) - log2 == 0,
    # so padded feature lanes stay identically zero through both layers and the
    # residual; padded node rows/cols only affect rows we slice away.
    x_p = jnp.pad(x.astype(jnp.float32), ((0, n_pad - N), (0, f_pad - F)))
    adj_p = jnp.pad(adj, ((0, n_pad - N), (0, n_pad - N)))
    w1_p = jnp.pad(w1.astype(jnp.float32), ((0, f_pad - F), (0, f_pad - F)))
    w2_p = jnp.pad(w2.astype(jnp.float32), ((0, f_pad - F), (0, f_pad - F)))
    b1_p = jnp.pad(b1.astype(jnp.float32), (0, f_pad - F)).reshape(1, f_pad)
    b2_p = jnp.pad(b2.astype(jnp.float32), (0, f_pad - F)).reshape(1, f_pad)

    cost = pl.CostEstimate(
        flops=2 * n_pad * n_pad * f_pad + 4 * n_pad * f_pad * f_pad,
        transcendentals=4 * n_pad * f_pad,
        bytes_accessed=(n_pad * n_pad * adj_itemsize
                        + 3 * n_pad * f_pad * 4
                        + 2 * f_pad * f_pad * 4),
    )

    row = lambda i: (i, 0)       # streams with the grid
    const = lambda i: (0, 0)     # VMEM-resident across the grid

    out_p = pl.pallas_call(
        _gcl_kernel,
        out_shape=jax.ShapeDtypeStruct((n_pad, f_pad), jnp.float32),
        grid=grid,
        in_specs=[
            pl.BlockSpec((tm, n_pad), row),        # adj row strip   (streams)
            pl.BlockSpec((tm, f_pad), row),        # x row tile      (residual)
            pl.BlockSpec((n_pad, f_pad), const),   # full x          (resident)
            pl.BlockSpec((f_pad, f_pad), const),   # w1              (resident)
            pl.BlockSpec((1, f_pad), const),       # b1              (resident)
            pl.BlockSpec((f_pad, f_pad), const),   # w2              (resident)
            pl.BlockSpec((1, f_pad), const),       # b2              (resident)
        ],
        out_specs=pl.BlockSpec((tm, f_pad), row),
        compiler_params=pltpu.CompilerParams(
            dimension_semantics=("parallel",),
            vmem_limit_bytes=_VMEM_LIMIT,
        ),
        cost_estimate=cost,
    )(adj_p, x_p, x_p, w1_p, b1_p, w2_p, b2_p)

    # TODO(synk): for very large graphs where the full (N_pad, F_pad) x no longer
    # fits VMEM-resident, add a K-reduction grid axis over the adj @ x contraction
    # with an f32 VMEM scratch accumulator and pl.when init/finalize.
    return out_p[:N, :F]


def _init_linear_params(key, in_features, out_features):
    # PyTorch nn.Linear default init: U(-1/sqrt(in), 1/sqrt(in)) for W and b.
    kw, kb = jax.random.split(key)
    bound = 1.0 / math.sqrt(in_features)
    # weight stored already transposed to (in, out)
    w = jax.random.uniform(kw, (in_features, out_features), jnp.float32,
                           minval=-bound, maxval=bound)
    b = jax.random.uniform(kb, (out_features,), jnp.float32,
                           minval=-bound, maxval=bound)
    return w, b


if __name__ == "__main__":
    key = jax.random.PRNGKey(0)
    k_x, k_e, k_adj, k_l1, k_l2 = jax.random.split(key, 5)

    N = 64          # number of nodes
    FEAT = 32       # in_features == out_features (residual connection)

    x = jax.random.normal(k_x, (N, FEAT), jnp.float32)
    e = jax.random.normal(k_e, (N, N, 8), jnp.float32)   # unused edge features
    adj_f32 = (jax.random.uniform(k_adj, (N, N)) < 0.2).astype(jnp.float32)
    # 0/1 adjacency is exactly representable in bf16 -> halves HBM traffic on
    # the kernel's dominant N^2 operand (use int8 on v5e/v6e if desired).
    adj = adj_f32.astype(jnp.bfloat16)

    w1, b1 = _init_linear_params(k_l1, FEAT, FEAT)
    w2, b2 = _init_linear_params(k_l2, FEAT, FEAT)

    out = graph_convolution_layer(x, e, adj, w1, b1, w2, b2)
    out = jax.block_until_ready(out)

    # pure-JAX reference for sanity
    def ref(x, adj):
        h = adj @ x
        h = jax.nn.softplus(h @ w1 + b1) - SHIFT
        h = jax.nn.softplus(h @ w2 + b2) - SHIFT
        return x + h

    expected = ref(x, adj_f32)
    assert out.shape == expected.shape
    assert jnp.allclose(out, expected, atol=1e-4, rtol=1e-4), "mismatch vs reference"

    print("KERNEL_OK")
</pallas_src>

<mosaic_0001>
module attributes {stable_mosaic.version = 11 : i64} {
  func.func @_gcl_kernel(%arg0: i32, %arg1: memref<64x64xbf16, #tpu.memory_space<vmem>>, %arg2: memref<64x128xf32, #tpu.memory_space<vmem>>, %arg3: memref<64x128xf32, #tpu.memory_space<vmem>>, %arg4: memref<128x128xf32, #tpu.memory_space<vmem>>, %arg5: memref<1x128xf32, #tpu.memory_space<vmem>>, %arg6: memref<128x128xf32, #tpu.memory_space<vmem>>, %arg7: memref<1x128xf32, #tpu.memory_space<vmem>>, %arg8: memref<64x128xf32, #tpu.memory_space<vmem>>) attributes {dimension_semantics = [#tpu.dimension_semantics<parallel>], iteration_bounds = array<i64: 1>, scalar_prefetch = 0 : i64, scratch_operands = 0 : i64, tpu.core_type = #tpu.core_type<tc>, window_params = [{transform_indices = @transform_0, window_bounds = array<i64: 64, 64>}, {transform_indices = @transform_1, window_bounds = array<i64: 64, 128>}, {pipeline_mode = #tpu.pipeline_mode<synchronous>, transform_indices = @transform_2, window_bounds = array<i64: 64, 128>}, {pipeline_mode = #tpu.pipeline_mode<synchronous>, transform_indices = @transform_3, window_bounds = array<i64: 128, 128>}, {pipeline_mode = #tpu.pipeline_mode<synchronous>, transform_indices = @transform_4, window_bounds = array<i64: 1, 128>}, {pipeline_mode = #tpu.pipeline_mode<synchronous>, transform_indices = @transform_5, window_bounds = array<i64: 128, 128>}, {pipeline_mode = #tpu.pipeline_mode<synchronous>, transform_indices = @transform_6, window_bounds = array<i64: 1, 128>}, {transform_indices = @transform_7, window_bounds = array<i64: 64, 128>}]} {
    %c0 = arith.constant 0 : index
    %c0_0 = arith.constant 0 : index
    %0 = vector.load %arg1[%c0, %c0_0] : memref<64x64xbf16, #tpu.memory_space<vmem>>, vector<64x64xbf16>
    %1 = arith.extf %0 : vector<64x64xbf16> to vector<64x64xf32>
    %c0_1 = arith.constant 0 : index
    %c0_2 = arith.constant 0 : index
    %2 = vector.load %arg3[%c0_1, %c0_2] : memref<64x128xf32, #tpu.memory_space<vmem>>, vector<64x128xf32>
    %cst = arith.constant dense<0.000000e+00> : vector<64x128xf32>
    %3 = tpu.matmul %1, %2, %cst {dimension_numbers = #tpu.dot_dimension_numbers<[1], [0], [0], [1], [0, 0, 1, 1], [], []>} : vector<64x64xf32>, vector<64x128xf32>, vector<64x128xf32> -> vector<64x128xf32>
    %c0_3 = arith.constant 0 : index
    %c0_4 = arith.constant 0 : index
    %4 = vector.load %arg4[%c0_3, %c0_4] : memref<128x128xf32, #tpu.memory_space<vmem>>, vector<128x128xf32>
    %cst_5 = arith.constant dense<0.000000e+00> : vector<64x128xf32>
    %5 = tpu.matmul %3, %4, %cst_5 {dimension_numbers = #tpu.dot_dimension_numbers<[1], [0], [0], [1], [0, 0, 1, 1], [], []>} : vector<64x128xf32>, vector<128x128xf32>, vector<64x128xf32> -> vector<64x128xf32>
    %c0_6 = arith.constant 0 : index
    %c0_7 = arith.constant 0 : index
    %6 = vector.load %arg5[%c0_6, %c0_7] : memref<1x128xf32, #tpu.memory_space<vmem>>, vector<1x128xf32>
    %7 = vector.broadcast %6 : vector<1x128xf32> to vector<64x128xf32>
    %8 = arith.addf %5, %7 : vector<64x128xf32>
    %cst_8 = arith.constant 0.000000e+00 : f32
    %9 = vector.broadcast %cst_8 : f32 to vector<64x128xf32>
    %10 = arith.maximumf %8, %9 : vector<64x128xf32>
    %11 = vector.broadcast %cst_8 : f32 to vector<64x128xf32>
    %12 = arith.subf %8, %11 : vector<64x128xf32>
    %13 = arith.cmpf one, %12, %12 : vector<64x128xf32>
    %14 = vector.broadcast %cst_8 : f32 to vector<64x128xf32>
    %15 = arith.addf %8, %14 : vector<64x128xf32>
    %16 = math.absf %12 : vector<64x128xf32>
    %cst_9 = arith.constant 0.000000e+00 : f32
    %17 = vector.broadcast %cst_9 : f32 to vector<64x128xf32>
    %18 = arith.subf %17, %16 : vector<64x128xf32>
    %19 = math.exp %18 : vector<64x128xf32>
    %20 = math.log1p %19 : vector<64x128xf32>
    %21 = arith.addf %10, %20 : vector<64x128xf32>
    %22 = arith.select %13, %15, %21 : vector<64x128xi1>, vector<64x128xf32>
    %cst_10 = arith.constant 0.693147182 : f32
    %23 = vector.broadcast %cst_10 : f32 to vector<64x128xf32>
    %24 = arith.subf %22, %23 : vector<64x128xf32>
    %c0_11 = arith.constant 0 : index
    %c0_12 = arith.constant 0 : index
    %25 = vector.load %arg6[%c0_11, %c0_12] : memref<128x128xf32, #tpu.memory_space<vmem>>, vector<128x128xf32>
    %cst_13 = arith.constant dense<0.000000e+00> : vector<64x128xf32>
    %26 = tpu.matmul %24, %25, %cst_13 {dimension_numbers = #tpu.dot_dimension_numbers<[1], [0], [0], [1], [0, 0, 1, 1], [], []>} : vector<64x128xf32>, vector<128x128xf32>, vector<64x128xf32> -> vector<64x128xf32>
    %c0_14 = arith.constant 0 : index
    %c0_15 = arith.constant 0 : index
    %27 = vector.load %arg7[%c0_14, %c0_15] : memref<1x128xf32, #tpu.memory_space<vmem>>, vector<1x128xf32>
    %28 = vector.broadcast %27 : vector<1x128xf32> to vector<64x128xf32>
    %29 = arith.addf %26, %28 : vector<64x128xf32>
    %cst_16 = arith.constant 0.000000e+00 : f32
    %30 = vector.broadcast %cst_16 : f32 to vector<64x128xf32>
    %31 = arith.maximumf %29, %30 : vector<64x128xf32>
    %32 = vector.broadcast %cst_16 : f32 to vector<64x128xf32>
    %33 = arith.subf %29, %32 : vector<64x128xf32>
    %34 = arith.cmpf one, %33, %33 : vector<64x128xf32>
    %35 = vector.broadcast %cst_16 : f32 to vector<64x128xf32>
    %36 = arith.addf %29, %35 : vector<64x128xf32>
    %37 = math.absf %33 : vector<64x128xf32>
    %cst_17 = arith.constant 0.000000e+00 : f32
    %38 = vector.broadcast %cst_17 : f32 to vector<64x128xf32>
    %39 = arith.subf %38, %37 : vector<64x128xf32>
    %40 = math.exp %39 : vector<64x128xf32>
    %41 = math.log1p %40 : vector<64x128xf32>
    %42 = arith.addf %31, %41 : vector<64x128xf32>
    %43 = arith.select %34, %36, %42 : vector<64x128xi1>, vector<64x128xf32>
    %cst_18 = arith.constant 0.693147182 : f32
    %44 = vector.broadcast %cst_18 : f32 to vector<64x128xf32>
    %45 = arith.subf %43, %44 : vector<64x128xf32>
    %c0_19 = arith.constant 0 : index
    %c0_20 = arith.constant 0 : index
    %46 = vector.load %arg2[%c0_19, %c0_20] : memref<64x128xf32, #tpu.memory_space<vmem>>, vector<64x128xf32>
    %47 = arith.addf %46, %45 : vector<64x128xf32>
    %c0_21 = arith.constant 0 : index
    %c0_22 = arith.constant 0 : index
    %48 = vector.load %arg8[%c0_21, %c0_22] : memref<64x128xf32, #tpu.memory_space<vmem>>, vector<64x128xf32>
    tpu.vector_store %arg8[%c0_21, %c0_22], %47 {strides = array<i32>} : memref<64x128xf32, #tpu.memory_space<vmem>>, vector<64x128xf32>,
    return
  }
  func.func @transform_0(%arg0: i32) -> (i32, i32) {
    %c0_i32 = arith.constant 0 : i32
    %c0_i32_0 = arith.constant 0 : i32
    return %arg0, %c0_i32 : i32, i32
  }
  func.func @transform_1(%arg0: i32) -> (i32, i32) {
    %c0_i32 = arith.constant 0 : i32
    %c0_i32_0 = arith.constant 0 : i32
    return %arg0, %c0_i32 : i32, i32
  }
  func.func @transform_2(%arg0: i32) -> (i32, i32) {
    %c0_i32 = arith.constant 0 : i32
    %c0_i32_0 = arith.constant 0 : i32
    %c0_i32_1 = arith.constant 0 : i32
    return %c0_i32, %c0_i32_0 : i32, i32
  }
  func.func @transform_3(%arg0: i32) -> (i32, i32) {
    %c0_i32 = arith.constant 0 : i32
    %c0_i32_0 = arith.constant 0 : i32
    %c0_i32_1 = arith.constant 0 : i32
    return %c0_i32, %c0_i32_0 : i32, i32
  }
  func.func @transform_4(%arg0: i32) -> (i32, i32) {
    %c0_i32 = arith.constant 0 : i32
    %c0_i32_0 = arith.constant 0 : i32
    %c0_i32_1 = arith.constant 0 : i32
    return %c0_i32, %c0_i32_0 : i32, i32
  }
  func.func @transform_5(%arg0: i32) -> (i32, i32) {
    %c0_i32 = arith.constant 0 : i32
    %c0_i32_0 = arith.constant 0 : i32
    %c0_i32_1 = arith.constant 0 : i32
    return %c0_i32, %c0_i32_0 : i32, i32
  }
  func.func @transform_6(%arg0: i32) -> (i32, i32) {
    %c0_i32 = arith.constant 0 : i32
    %c0_i32_0 = arith.constant 0 : i32
    %c0_i32_1 = arith.constant 0 : i32
    return %c0_i32, %c0_i32_0 : i32, i32
  }
  func.func @transform_7(%arg0: i32) -> (i32, i32) {
    %c0_i32 = arith.constant 0 : i32
    %c0_i32_0 = arith.constant 0 : i32
    return %arg0, %c0_i32 : i32, i32
  }
}

</mosaic_0001>

<llo_original>
// kernel: tpu_custom_call.1
$region0: #{tpu_custom_call.1}
  #allocation0 [shape = 'u32[]', space=smem, size = 0x4, offset = 0x4, fixed_abs, tag = 'smem constant byte address 0x4 - core index']
  #allocation1 [shape = 'u32[144,128]{1,0:T(1,128)}', space=vmem, size = 0x12000, scoped, tag = 'internal scratch']
  %s0 = inlined_call_operand.hbm [shape: bf16[64,64], index: 0, kind: input, shape index: {}]
  %s1 = inlined_call_operand.hbm [shape: f32[64,128], index: 1, kind: input, shape index: {}]
  %s2 = inlined_call_operand.hbm [shape: f32[64,128], index: 2, kind: input, shape index: {}]
  %s3 = inlined_call_operand.hbm [shape: f32[128,128], index: 3, kind: input, shape index: {}]
  %s4 = inlined_call_operand.vmem [shape: f32[1,128], index: 4, kind: input, shape index: {}]
  %s5 = inlined_call_operand.hbm [shape: f32[128,128], index: 5, kind: input, shape index: {}]
  %s6 = inlined_call_operand.vmem [shape: f32[1,128], index: 6, kind: input, shape index: {}]
  %s7 = inlined_call_operand.hbm [shape: f32[64,128], index: 7, kind: output, shape index: {}]
  %s8 = sld [smem:[#allocation0]]
  $region58: #{tpu_custom_call.1} parent=0
    _
  %s10 = ssub.s32 1, %s8
  %s11 = scalar_select 0, %s10, %s8
  $region1: #{tpu_custom_call.1} parent=0
    #allocation2 [shape = 'u8[16384]{0}', space=vmem, size = 0x4000, scoped, tag = 'input window, operand 0, single buffered']
    #allocation3 [shape = 's32[1]{0}', space=sflag, size = 0x4, scoped, tag = 'scoped memory for tpu_custom_call.1']
    #allocation4 [shape = 's32[1]{0}', space=sflag, size = 0x4, scoped, tag = 'scoped memory for tpu_custom_call.1']
    #allocation5 [shape = 'u8[32768]{0}', space=vmem, size = 0x8000, scoped, tag = 'input window, operand 1, single buffered']
    #allocation6 [shape = 's32[1]{0}', space=sflag, size = 0x4, scoped, tag = 'scoped memory for tpu_custom_call.1']
    #allocation7 [shape = 'u8[32768]{0}', space=vmem, size = 0x8000, scoped, tag = 'input window, operand 2, single buffered']
    #allocation8 [shape = 'u8[65536]{0}', space=vmem, size = 0x10000, scoped, tag = 'input window, operand 3, single buffered']
    #allocation9 [shape = 's32[1]{0}', space=sflag, size = 0x4, scoped, tag = 'scoped memory for tpu_custom_call.1']
    #allocation10 [shape = 'u8[65536]{0}', space=vmem, size = 0x10000, scoped, tag = 'input window, operand 5, single buffered']
    #allocation11 [shape = 'u8[32768]{0}', space=vmem, size = 0x8000, scoped, tag = 'output window, operand 0, single buffered']
    %12 = vsyncpa [#allocation3], 0
    %13 = vsyncpa [#allocation6], 0
    %14 = vsyncpa [#allocation9], 0
    %15 = vsyncpa [#allocation4], 0
    // Predicated region
    $region2: #{tpu_custom_call.1} parent=1 // pred_check
      _
    $region3: #{tpu_custom_call.1} parent=1 // pred_check_branch
      %17 = sbr.rel (0) target = $region5
    $region4: #{tpu_custom_call.1} parent=1 // pred_region
      %s19 = ssub.s32 512, 512
      %20 = vsyncadd [#allocation3], %s19
      %s21 = sshll.u32 [#allocation2], 4
      %s22 = int_to_ptr.vmem [resolvable:$true] %s21
      %27 = dma.hbm_to_vmem [thread:$0]  %s0, 512, %s22, [#allocation3], 64, 64, 4
    $region5: #{tpu_custom_call.1} parent=1 // pred_fallthru
      _
    // Predicated region
    $region6: #{tpu_custom_call.1} parent=1 // pred_check
      _
    $region7: #{tpu_custom_call.1} parent=1 // pred_check_branch
      %29 = sbr.rel (0) target = $region9
    $region8: #{tpu_custom_call.1} parent=1 // pred_region
      %s31 = ssub.s32 1024, 1024
      %32 = vsyncadd [#allocation6], %s31
      %s33 = sshll.u32 [#allocation5], 4
      %s34 = int_to_ptr.vmem [resolvable:$true] %s33
      %39 = dma.hbm_to_vmem [thread:$0]  %s1, 1024, %s34, [#allocation6], 128, 128, 8
    $region9: #{tpu_custom_call.1} parent=1 // pred_fallthru
      _
    // Predicated region
    $region10: #{tpu_custom_call.1} parent=1 // pred_check
      _
    $region11: #{tpu_custom_call.1} parent=1 // pred_check_branch
      %41 = sbr.rel (0) target = $region13
    $region12: #{tpu_custom_call.1} parent=1 // pred_region
      %s43 = ssub.s32 1024, 1024
      %44 = vsyncadd [#allocation6], %s43
      %s45 = sshll.u32 [#allocation7], 4
      %s46 = int_to_ptr.vmem [resolvable:$true] %s45
      %51 = dma.hbm_to_vmem [thread:$0]  %s2, 1024, %s46, [#allocation6], 128, 128, 8
    $region13: #{tpu_custom_call.1} parent=1 // pred_fallthru
      _
    // Predicated region
    $region14: #{tpu_custom_call.1} parent=1 // pred_check
      _
    $region15: #{tpu_custom_call.1} parent=1 // pred_check_branch
      %53 = sbr.rel (0) target = $region17
    $region16: #{tpu_custom_call.1} parent=1 // pred_region
      %s55 = ssub.s32 2048, 2048
      %56 = vsyncadd [#allocation9], %s55
      %s57 = sshll.u32 [#allocation8], 4
      %s58 = int_to_ptr.vmem [resolvable:$true] %s57
      %63 = dma.hbm_to_vmem [thread:$0]  %s3, 2048, %s58, [#allocation9], 128, 128, 8
    $region17: #{tpu_custom_call.1} parent=1 // pred_fallthru
      _
    // Predicated region
    $region18: #{tpu_custom_call.1} parent=1 // pred_check
      _
    $region19: #{tpu_custom_call.1} parent=1 // pred_check_branch
      %65 = sbr.rel (0) target = $region21
    $region20: #{tpu_custom_call.1} parent=1 // pred_region
      _
    $region21: #{tpu_custom_call.1} parent=1 // pred_fallthru
      _
    // Predicated region
    $region22: #{tpu_custom_call.1} parent=1 // pred_check
      _
    $region23: #{tpu_custom_call.1} parent=1 // pred_check_branch
      %67 = sbr.rel (0) target = $region25
    $region24: #{tpu_custom_call.1} parent=1 // pred_region
      %s69 = ssub.s32 2048, 2048
      %70 = vsyncadd [#allocation9], %s69
      %s71 = sshll.u32 [#allocation10], 4
      %s72 = int_to_ptr.vmem [resolvable:$true] %s71
      %77 = dma.hbm_to_vmem [thread:$0]  %s5, 2048, %s72, [#allocation9], 128, 128, 8
    $region25: #{tpu_custom_call.1} parent=1 // pred_fallthru
      _
    // Predicated region
    $region26: #{tpu_custom_call.1} parent=1 // pred_check
      _
    $region27: #{tpu_custom_call.1} parent=1 // pred_check_branch
      %79 = sbr.rel (0) target = $region29
    $region28: #{tpu_custom_call.1} parent=1 // pred_region
      _
    $region29: #{tpu_custom_call.1} parent=1 // pred_fallthru
      _
    // Predicated region
    $region30: #{tpu_custom_call.1} parent=1 // pred_check
      _
    $region31: #{tpu_custom_call.1} parent=1 // pred_check_branch
      %81 = sbr.rel (0) target = $region33
    $region32: #{tpu_custom_call.1} parent=1 // pred_region
      %82 = dma.done [#allocation3], 512
    $region33: #{tpu_custom_call.1} parent=1 // pred_fallthru
      _
    // Predicated region
    $region34: #{tpu_custom_call.1} parent=1 // pred_check
      _
    $region35: #{tpu_custom_call.1} parent=1 // pred_check_branch
      %84 = sbr.rel (0) target = $region37
    $region36: #{tpu_custom_call.1} parent=1 // pred_region
      %85 = dma.done [#allocation6], 1024
    $region37: #{tpu_custom_call.1} parent=1 // pred_fallthru
      _
    // Predicated region
    $region38: #{tpu_custom_call.1} parent=1 // pred_check
      _
    $region39: #{tpu_custom_call.1} parent=1 // pred_check_branch
      %87 = sbr.rel (0) target = $region41
    $region40: #{tpu_custom_call.1} parent=1 // pred_region
      %88 = dma.done [#allocation6], 1024
    $region41: #{tpu_custom_call.1} parent=1 // pred_fallthru
      _
    // Predicated region
    $region42: #{tpu_custom_call.1} parent=1 // pred_check
      _
    $region43: #{tpu_custom_call.1} parent=1 // pred_check_branch
      %90 = sbr.rel (0) target = $region45
    $region44: #{tpu_custom_call.1} parent=1 // pred_region
      %91 = dma.done [#allocation9], 2048
    $region45: #{tpu_custom_call.1} parent=1 // pred_fallthru
      _
    // Predicated region
    $region46: #{tpu_custom_call.1} parent=1 // pred_check
      _
    $region47: #{tpu_custom_call.1} parent=1 // pred_check_branch
      %93 = sbr.rel (0) target = $region49
    $region48: #{tpu_custom_call.1} parent=1 // pred_region
      %94 = dma.done [#allocation9], 2048
    $region49: #{tpu_custom_call.1} parent=1 // pred_fallthru
      _
    %v95 = vld [vmem:[#allocation2] sm:$0xf]
    %v96 = vld [vmem:[#allocation2 + $0x4] sm:$0xf]
    %v97 = vld [vmem:[#allocation2 + $0x8] sm:$0xf]
    %v98 = vld [vmem:[#allocation2 + $0xc] sm:$0xf]
    %v99 = vld [vmem:[#allocation2 + $0x10] sm:$0xf]
    %v100 = vld [vmem:[#allocation2 + $0x14] sm:$0xf]
    %v101 = vld [vmem:[#allocation2 + $0x18] sm:$0xf]
    %v102 = vld [vmem:[#allocation2 + $0x1c] sm:$0xf]
    %v103 = vunpack.c.l.bf16 %v95
    %v104 = vunpack.c.l.bf16 %v96
    %v105 = vunpack.c.l.bf16 %v97
    %v106 = vunpack.c.l.bf16 %v98
    %v107 = vunpack.c.l.bf16 %v99
    %v108 = vunpack.c.l.bf16 %v100
    %v109 = vunpack.c.l.bf16 %v101
    %v110 = vunpack.c.l.bf16 %v102
    %v111 = vld [vmem:[#allocation7] sm:$0xff]
    %v112 = vld [vmem:[#allocation7 + $0x8] sm:$0xff]
    %v113 = vld [vmem:[#allocation7 + $0x10] sm:$0xff]
    %v114 = vld [vmem:[#allocation7 + $0x18] sm:$0xff]
    %v115 = vld [vmem:[#allocation7 + $0x20] sm:$0xff]
    %v116 = vld [vmem:[#allocation7 + $0x28] sm:$0xff]
    %v117 = vld [vmem:[#allocation7 + $0x30] sm:$0xff]
    %v118 = vld [vmem:[#allocation7 + $0x38] sm:$0xff]
    %vm119 = vcmask 523264
    %v121 = vsel %vm119, %v103, 0
    %v124 = vsel %vm119, %v104, 0
    %v127 = vsel %vm119, %v105, 0
    %v130 = vsel %vm119, %v106, 0
    %v133 = vsel %vm119, %v107, 0
    %v136 = vsel %vm119, %v108, 0
    %v139 = vsel %vm119, %v109, 0
    %v142 = vsel %vm119, %v110, 0
    %144 = vmatprep.subr.mxu0 0.0
    %145 = vmatpush1.msra.mxu0 %v111
    %146 = vmatprep.subr.mxu0 0.0
    %147 = vmatpush1.msra.mxu0 %v112
    %148 = vmatprep.subr.mxu0 0.0
    %149 = vmatpush1.msra.mxu0 %v113
    %150 = vmatprep.subr.mxu0 0.0
    %151 = vmatpush1.msra.mxu0 %v114
    %152 = vmatprep.subr.mxu0 0.0
    %153 = vmatpush1.msra.mxu0 %v115
    %154 = vmatprep.subr.mxu0 0.0
    %155 = vmatpush1.msra.mxu0 %v116
    %156 = vmatprep.subr.mxu0 0.0
    %157 = vmatpush1.msra.mxu0 %v117
    %158 = vmatprep.subr.mxu0 0.0
    %159 = vmatpush1.msra.mxu0 %v118
    %160 = vmatprep.subr.mxu0 0.0
    %161 = vmatpush1.msra.mxu0 0.0
    %162 = vmatprep.subr.mxu0 0.0
    %163 = vmatpush1.msra.mxu0 0.0
    %164 = vmatprep.subr.mxu0 0.0
    %165 = vmatpush1.msra.mxu0 0.0
    %166 = vmatprep.subr.mxu0 0.0
    %167 = vmatpush1.msra.mxu0 0.0
    %168 = vmatprep.subr.mxu0 0.0
    %169 = vmatpush1.msra.mxu0 0.0
    %170 = vmatprep.subr.mxu0 0.0
    %171 = vmatpush1.msra.mxu0 0.0
    %172 = vmatprep.subr.mxu0 0.0
    %173 = vmatpush1.msra.mxu0 0.0
    %174 = vmatprep.subr.mxu0 0.0
    %175 = vmatpush1.msra.mxu0 0.0
    %176 = vmatprep.subr.mxu0 0.0
    %177 = vmatpush1.msra.mxu0 0.0
    %178 = vmatprep.subr.mxu0 0.0
    %179 = vmatpush1.msra.mxu0 0.0
    %180 = vmatprep.subr.mxu0 0.0
    %181 = vmatpush1.msra.mxu0 0.0
    %182 = vmatprep.subr.mxu0 0.0
    %183 = vmatpush1.msra.mxu0 0.0
    %184 = vmatprep.subr.mxu0 0.0
    %185 = vmatpush1.msra.mxu0 0.0
    %186 = vmatprep.subr.mxu0 0.0
    %187 = vmatpush1.msra.mxu0 0.0
    %188 = vmatprep.subr.mxu0 0.0
    %189 = vmatpush1.msra.mxu0 0.0
    %190 = vmatprep.subr.mxu0 0.0
    %191 = vmatpush1.msra.mxu0 0.0
    %192 = vmatprep.subr.mxu0 0.0
    %193 = vmatpush1.msra.mxu0 0.0
    %194 = vmatprep.subr.mxu0 0.0
    %195 = vmatpush1.msra.mxu0 0.0
    %196 = vmatprep.subr.mxu0 0.0
    %197 = vmatpush1.msra.mxu0 0.0
    %198 = vmatprep.subr.mxu0 0.0
    %199 = vmatpush1.msra.mxu0 0.0
    %200 = vmatprep.subr.mxu0 0.0
    %201 = vmatpush1.msra.mxu0 0.0
    %202 = vmatprep.subr.mxu0 0.0
    %203 = vmatpush1.msra.mxu0 0.0
    %204 = vmatprep.subr.mxu0 0.0
    %205 = vmatpush1.msra.mxu0 0.0
    %206 = vmatprep.subr.mxu0 0.0
    %207 = vmatpush1.msra.mxu0 0.0
    %208 = vmatprep.mubr.f32.mxu0 0.0
    %209 = vmatmul.mubr.f32.gmra.mrb[0].mxu0 %v121
    %v210 = vpop.f32.mrb[0].mxu0
    %v211 = vadd.f32 0.0, %v210
    %v212 = vpop.f32.mrb[0].mxu0
    %213 = vmatprep.mubr.f32.mxu0 0.0
    %214 = vmatmul.mubr.f32.gmra.mrb[0].mxu0 %v124
    %v215 = vpop.f32.mrb[0].mxu0
    %v216 = vadd.f32 0.0, %v215
    %v217 = vpop.f32.mrb[0].mxu0
    %218 = vmatprep.mubr.f32.mxu0 0.0
    %219 = vmatmul.mubr.f32.gmra.mrb[0].mxu0 %v127
    %v220 = vpop.f32.mrb[0].mxu0
    %v221 = vadd.f32 0.0, %v220
    %v222 = vpop.f32.mrb[0].mxu0
    %223 = vmatprep.mubr.f32.mxu0 0.0
    %224 = vmatmul.mubr.f32.gmra.mrb[0].mxu0 %v130
    %v225 = vpop.f32.mrb[0].mxu0
    %v226 = vadd.f32 0.0, %v225
    %v227 = vpop.f32.mrb[0].mxu0
    %228 = vmatprep.mubr.f32.mxu0 0.0
    %229 = vmatmul.mubr.f32.gmra.mrb[0].mxu0 %v133
    %v230 = vpop.f32.mrb[0].mxu0
    %v231 = vadd.f32 0.0, %v230
    %v232 = vpop.f32.mrb[0].mxu0
    %233 = vmatprep.mubr.f32.mxu0 0.0
    %234 = vmatmul.mubr.f32.gmra.mrb[0].mxu0 %v136
    %v235 = vpop.f32.mrb[0].mxu0
    %v236 = vadd.f32 0.0, %v235
    %v237 = vpop.f32.mrb[0].mxu0
    %238 = vmatprep.mubr.f32.mxu0 0.0
    %239 = vmatmul.mubr.f32.gmra.mrb[0].mxu0 %v139
    %v240 = vpop.f32.mrb[0].mxu0
    %v241 = vadd.f32 0.0, %v240
    %v242 = vpop.f32.mrb[0].mxu0
    %243 = vmatprep.mubr.f32.mxu0 0.0
    %244 = vmatmul.mubr.f32.gmra.mrb[0].mxu0 %v142
    %v245 = vpop.f32.mrb[0].mxu0
    %v246 = vadd.f32 0.0, %v245
    %v247 = vpop.f32.mrb[0].mxu0
    %248 = vdwg.mxu0
    %v249 = vld [vmem:[#allocation8] sm:$0xff]
    %v250 = vld [vmem:[#allocation8 + $0x8] sm:$0xff]
    %v251 = vld [vmem:[#allocation8 + $0x10] sm:$0xff]
    %v252 = vld [vmem:[#allocation8 + $0x18] sm:$0xff]
    %v253 = vld [vmem:[#allocation8 + $0x20] sm:$0xff]
    %v254 = vld [vmem:[#allocation8 + $0x28] sm:$0xff]
    %v255 = vld [vmem:[#allocation8 + $0x30] sm:$0xff]
    %v256 = vld [vmem:[#allocation8 + $0x38] sm:$0xff]
    %v257 = vld [vmem:[#allocation8 + $0x40] sm:$0xff]
    %v258 = vld [vmem:[#allocation8 + $0x48] sm:$0xff]
    %v259 = vld [vmem:[#allocation8 + $0x50] sm:$0xff]
    %v260 = vld [vmem:[#allocation8 + $0x58] sm:$0xff]
    %v261 = vld [vmem:[#allocation8 + $0x60] sm:$0xff]
    %v262 = vld [vmem:[#allocation8 + $0x68] sm:$0xff]
    %v263 = vld [vmem:[#allocation8 + $0x70] sm:$0xff]
    %v264 = vld [vmem:[#allocation8 + $0x78] sm:$0xff]
    %v265 = vld [vmem:[%s4] sm:$0x1]
    %v267 = vlaneseq
    %v268 = vshrl.u32 %v267, 7
    %v269 = vsub.s32 0, %v268
    %v270 = vrot.slane %v265, %v269
    %272 = vmatprep.subr.mxu0 0.0
    %273 = vmatpush1.msra.mxu0 %v249
    %274 = vmatprep.subr.mxu0 0.0
    %275 = vmatpush1.msra.mxu0 %v250
    %276 = vmatprep.subr.mxu0 0.0
    %277 = vmatpush1.msra.mxu0 %v251
    %278 = vmatprep.subr.mxu0 0.0
    %279 = vmatpush1.msra.mxu0 %v252
    %280 = vmatprep.subr.mxu0 0.0
    %281 = vmatpush1.msra.mxu0 %v253
    %282 = vmatprep.subr.mxu0 0.0
    %283 = vmatpush1.msra.mxu0 %v254
    %284 = vmatprep.subr.mxu0 0.0
    %285 = vmatpush1.msra.mxu0 %v255
    %286 = vmatprep.subr.mxu0 0.0
    %287 = vmatpush1.msra.mxu0 %v256
    %288 = vmatprep.subr.mxu0 0.0
    %289 = vmatpush1.msra.mxu0 %v257
    %290 = vmatprep.subr.mxu0 0.0
    %291 = vmatpush1.msra.mxu0 %v258
    %292 = vmatprep.subr.mxu0 0.0
    %293 = vmatpush1.msra.mxu0 %v259
    %294 = vmatprep.subr.mxu0 0.0
    %295 = vmatpush1.msra.mxu0 %v260
    %296 = vmatprep.subr.mxu0 0.0
    %297 = vmatpush1.msra.mxu0 %v261
    %298 = vmatprep.subr.mxu0 0.0
    %299 = vmatpush1.msra.mxu0 %v262
    %300 = vmatprep.subr.mxu0 0.0
    %301 = vmatpush1.msra.mxu0 %v263
    %302 = vmatprep.subr.mxu0 0.0
    %303 = vmatpush1.msra.mxu0 %v264
    %304 = vmatprep.subr.mxu0 0.0
    %305 = vmatpush1.msra.mxu0 0.0
    %306 = vmatprep.subr.mxu0 0.0
    %307 = vmatpush1.msra.mxu0 0.0
    %308 = vmatprep.subr.mxu0 0.0
    %309 = vmatpush1.msra.mxu0 0.0
    %310 = vmatprep.subr.mxu0 0.0
    %311 = vmatpush1.msra.mxu0 0.0
    %312 = vmatprep.subr.mxu0 0.0
    %313 = vmatpush1.msra.mxu0 0.0
    %314 = vmatprep.subr.mxu0 0.0
    %315 = vmatpush1.msra.mxu0 0.0
    %316 = vmatprep.subr.mxu0 0.0
    %317 = vmatpush1.msra.mxu0 0.0
    %318 = vmatprep.subr.mxu0 0.0
    %319 = vmatpush1.msra.mxu0 0.0
    %320 = vmatprep.subr.mxu0 0.0
    %321 = vmatpush1.msra.mxu0 0.0
    %322 = vmatprep.subr.mxu0 0.0
    %323 = vmatpush1.msra.mxu0 0.0
    %324 = vmatprep.subr.mxu0 0.0
    %325 = vmatpush1.msra.mxu0 0.0
    %326 = vmatprep.subr.mxu0 0.0
    %327 = vmatpush1.msra.mxu0 0.0
    %328 = vmatprep.subr.mxu0 0.0
    %329 = vmatpush1.msra.mxu0 0.0
    %330 = vmatprep.subr.mxu0 0.0
    %331 = vmatpush1.msra.mxu0 0.0
    %332 = vmatprep.subr.mxu0 0.0
    %333 = vmatpush1.msra.mxu0 0.0
    %334 = vmatprep.subr.mxu0 0.0
    %335 = vmatpush1.msra.mxu0 0.0
    %336 = vmatprep.mubr.f32.mxu0 0.0
    %337 = vmatmul.mubr.f32.gmra.mrb[0].mxu0 %v211
    %v338 = vpop.f32.mrb[0].mxu0
    %v339 = vadd.f32 %v270, %v338
    %v340 = vpop.f32.mrb[0].mxu0
    %341 = vmatprep.mubr.f32.mxu0 0.0
    %342 = vmatmul.mubr.f32.gmra.mrb[0].mxu0 %v216
    %v343 = vpop.f32.mrb[0].mxu0
    %v344 = vadd.f32 %v270, %v343
    %v345 = vpop.f32.mrb[0].mxu0
    %346 = vmatprep.mubr.f32.mxu0 0.0
    %347 = vmatmul.mubr.f32.gmra.mrb[0].mxu0 %v221
    %v348 = vpop.f32.mrb[0].mxu0
    %v349 = vadd.f32 %v270, %v348
    %v350 = vpop.f32.mrb[0].mxu0
    %351 = vmatprep.mubr.f32.mxu0 0.0
    %352 = vmatmul.mubr.f32.gmra.mrb[0].mxu0 %v226
    %v353 = vpop.f32.mrb[0].mxu0
    %v354 = vadd.f32 %v270, %v353
    %v355 = vpop.f32.mrb[0].mxu0
    %356 = vmatprep.mubr.f32.mxu0 0.0
    %357 = vmatmul.mubr.f32.gmra.mrb[0].mxu0 %v231
    %v358 = vpop.f32.mrb[0].mxu0
    %v359 = vadd.f32 %v270, %v358
    %v360 = vpop.f32.mrb[0].mxu0
    %361 = vmatprep.mubr.f32.mxu0 0.0
    %362 = vmatmul.mubr.f32.gmra.mrb[0].mxu0 %v236
    %v363 = vpop.f32.mrb[0].mxu0
    %v364 = vadd.f32 %v270, %v363
    %v365 = vpop.f32.mrb[0].mxu0
    %366 = vmatprep.mubr.f32.mxu0 0.0
    %367 = vmatmul.mubr.f32.gmra.mrb[0].mxu0 %v241
    %v368 = vpop.f32.mrb[0].mxu0
    %v369 = vadd.f32 %v270, %v368
    %v370 = vpop.f32.mrb[0].mxu0
    %371 = vmatprep.mubr.f32.mxu0 0.0
    %372 = vmatmul.mubr.f32.gmra.mrb[0].mxu0 %v246
    %v373 = vpop.f32.mrb[0].mxu0
    %v374 = vadd.f32 %v270, %v373
    %v375 = vpop.f32.mrb[0].mxu0
    %376 = vdwg.mxu0
    %v377 = vmax.f32 %v339, 0.0
    %v378 = vmax.f32 %v344, 0.0
    %v379 = vmax.f32 %v349, 0.0
    %v380 = vmax.f32 %v354, 0.0
    %v381 = vmax.f32 %v359, 0.0
    %v382 = vmax.f32 %v364, 0.0
    %v383 = vmax.f32 %v369, 0.0
    %v384 = vmax.f32 %v374, 0.0
    %vm385 = vcmp.ne.f32.partialorder %v339, %v339
    %vm386 = vcmp.ne.f32.partialorder %v344, %v344
    %vm387 = vcmp.ne.f32.partialorder %v349, %v349
    %vm388 = vcmp.ne.f32.partialorder %v354, %v354
    %vm389 = vcmp.ne.f32.partialorder %v359, %v359
    %vm390 = vcmp.ne.f32.partialorder %v364, %v364
    %vm391 = vcmp.ne.f32.partialorder %v369, %v369
    %vm392 = vcmp.ne.f32.partialorder %v374, %v374
    %v393 = vadd.f32 %v339, 0.0
    %v394 = vadd.f32 %v344, 0.0
    %v395 = vadd.f32 %v349, 0.0
    %v396 = vadd.f32 %v354, 0.0
    %v397 = vadd.f32 %v359, 0.0
    %v398 = vadd.f32 %v364, 0.0
    %v399 = vadd.f32 %v369, 0.0
    %v400 = vadd.f32 %v374, 0.0
    %v401 = vand.u32 2147483647, %v339
    %v402 = vand.u32 2147483647, %v344
    %v403 = vand.u32 2147483647, %v349
    %v404 = vand.u32 2147483647, %v354
    %v405 = vand.u32 2147483647, %v359
    %v406 = vand.u32 2147483647, %v364
    %v407 = vand.u32 2147483647, %v369
    %v408 = vand.u32 2147483647, %v374
    %v409 = vsub.f32 0.0, %v401
    %v410 = vsub.f32 0.0, %v402
    %v411 = vsub.f32 0.0, %v403
    %v412 = vsub.f32 0.0, %v404
    %v413 = vsub.f32 0.0, %v405
    %v414 = vsub.f32 0.0, %v406
    %v415 = vsub.f32 0.0, %v407
    %v416 = vsub.f32 0.0, %v408
    %v417 = vmul.f32 %v409, 1.442695
    %v418 = vpow.pop %v417
    %v419 = vmul.f32 %v410, 1.442695
    %v420 = vpow.pop %v419
    %v421 = vmul.f32 %v411, 1.442695
    %v422 = vpow.pop %v421
    %v423 = vmul.f32 %v412, 1.442695
    %v424 = vpow.pop %v423
    %v425 = vmul.f32 %v413, 1.442695
    %v426 = vpow.pop %v425
    %v427 = vmul.f32 %v414, 1.442695
    %v428 = vpow.pop %v427
    %v429 = vmul.f32 %v415, 1.442695
    %v430 = vpow.pop %v429
    %v431 = vmul.f32 %v416, 1.442695
    %v432 = vpow.pop %v431
    %v433 = vadd.f32 %v418, 1.0
    %v434 = vlog2.pop %v433
    %v435 = vmul.f32 %v434, 0.6931472
    %v436 = vmul.f32 -0.5, %v418
    %v437 = vadd.f32 %v436, 1.0
    %v438 = vmul.f32 %v437, %v418
    %v439 = vand.u32 2147483647, %v418
    %vm440 = vcmp.lt.f32.partialorder %v439, 0.0004427343
    %v441 = vsel %vm440, %v438, %v435
    %v442 = vadd.f32 %v420, 1.0
    %v443 = vlog2.pop %v442
    %v444 = vmul.f32 %v443, 0.6931472
    %v445 = vmul.f32 -0.5, %v420
    %v446 = vadd.f32 %v445, 1.0
    %v447 = vmul.f32 %v446, %v420
    %v448 = vand.u32 2147483647, %v420
    %vm449 = vcmp.lt.f32.partialorder %v448, 0.0004427343
    %v450 = vsel %vm449, %v447, %v444
    %v451 = vadd.f32 %v422, 1.0
    %v452 = vlog2.pop %v451
    %v453 = vmul.f32 %v452, 0.6931472
    %v454 = vmul.f32 -0.5, %v422
    %v455 = vadd.f32 %v454, 1.0
    %v456 = vmul.f32 %v455, %v422
    %v457 = vand.u32 2147483647, %v422
    %vm458 = vcmp.lt.f32.partialorder %v457, 0.0004427343
    %v459 = vsel %vm458, %v456, %v453
    %v460 = vadd.f32 %v424, 1.0
    %v461 = vlog2.pop %v460
    %v462 = vmul.f32 %v461, 0.6931472
    %v463 = vmul.f32 -0.5, %v424
    %v464 = vadd.f32 %v463, 1.0
    %v465 = vmul.f32 %v464, %v424
    %v466 = vand.u32 2147483647, %v424
    %vm467 = vcmp.lt.f32.partialorder %v466, 0.0004427343
    %v468 = vsel %vm467, %v465, %v462
    %v469 = vadd.f32 %v426, 1.0
    %v470 = vlog2.pop %v469
    %v471 = vmul.f32 %v470, 0.6931472
    %v472 = vmul.f32 -0.5, %v426
    %v473 = vadd.f32 %v472, 1.0
    %v474 = vmul.f32 %v473, %v426
    %v475 = vand.u32 2147483647, %v426
    %vm476 = vcmp.lt.f32.partialorder %v475, 0.0004427343
    %v477 = vsel %vm476, %v474, %v471
    %v478 = vadd.f32 %v428, 1.0
    %v479 = vlog2.pop %v478
    %v480 = vmul.f32 %v479, 0.6931472
    %v481 = vmul.f32 -0.5, %v428
    %v482 = vadd.f32 %v481, 1.0
    %v483 = vmul.f32 %v482, %v428
    %v484 = vand.u32 2147483647, %v428
    %vm485 = vcmp.lt.f32.partialorder %v484, 0.0004427343
    %v486 = vsel %vm485, %v483, %v480
    %v487 = vadd.f32 %v430, 1.0
    %v488 = vlog2.pop %v487
    %v489 = vmul.f32 %v488, 0.6931472
    %v490 = vmul.f32 -0.5, %v430
    %v491 = vadd.f32 %v490, 1.0
    %v492 = vmul.f32 %v491, %v430
    %v493 = vand.u32 2147483647, %v430
    %vm494 = vcmp.lt.f32.partialorder %v493, 0.0004427343
    %v495 = vsel %vm494, %v492, %v489
    %v496 = vadd.f32 %v432, 1.0
    %v497 = vlog2.pop %v496
    %v498 = vmul.f32 %v497, 0.6931472
    %v499 = vmul.f32 -0.5, %v432
    %v500 = vadd.f32 %v499, 1.0
    %v501 = vmul.f32 %v500, %v432
    %v502 = vand.u32 2147483647, %v432
    %vm503 = vcmp.lt.f32.partialorder %v502, 0.0004427343
    %v504 = vsel %vm503, %v501, %v498
    %v505 = vadd.f32 %v377, %v441
    %v506 = vadd.f32 %v378, %v450
    %v507 = vadd.f32 %v379, %v459
    %v508 = vadd.f32 %v380, %v468
    %v509 = vadd.f32 %v381, %v477
    %v510 = vadd.f32 %v382, %v486
    %v511 = vadd.f32 %v383, %v495
    %v512 = vadd.f32 %v384, %v504
    %v513 = vsel %vm385, %v393, %v505
    %v514 = vsel %vm386, %v394, %v506
    %v515 = vsel %vm387, %v395, %v507
    %v516 = vsel %vm388, %v396, %v508
    %v517 = vsel %vm389, %v397, %v509
    %v518 = vsel %vm390, %v398, %v510
    %v519 = vsel %vm391, %v399, %v511
    %v520 = vsel %vm392, %v400, %v512
    %v521 = vsub.f32 %v513, 0.6931472
    %v522 = vsub.f32 %v514, 0.6931472
    %v523 = vsub.f32 %v515, 0.6931472
    %v524 = vsub.f32 %v516, 0.6931472
    %v525 = vsub.f32 %v517, 0.6931472
    %v526 = vsub.f32 %v518, 0.6931472
    %v527 = vsub.f32 %v519, 0.6931472
    %v528 = vsub.f32 %v520, 0.6931472
    %v529 = vld [vmem:[#allocation10] sm:$0xff]
    %v530 = vld [vmem:[#allocation10 + $0x8] sm:$0xff]
    %v531 = vld [vmem:[#allocation10 + $0x10] sm:$0xff]
    %v532 = vld [vmem:[#allocation10 + $0x18] sm:$0xff]
    %v533 = vld [vmem:[#allocation10 + $0x20] sm:$0xff]
    %v534 = vld [vmem:[#allocation10 + $0x28] sm:$0xff]
    %v535 = vld [vmem:[#allocation10 + $0x30] sm:$0xff]
    %v536 = vld [vmem:[#allocation10 + $0x38] sm:$0xff]
    %v537 = vld [vmem:[#allocation10 + $0x40] sm:$0xff]
    %v538 = vld [vmem:[#allocation10 + $0x48] sm:$0xff]
    %v539 = vld [vmem:[#allocation10 + $0x50] sm:$0xff]
    %v540 = vld [vmem:[#allocation10 + $0x58] sm:$0xff]
    %v541 = vld [vmem:[#allocation10 + $0x60] sm:$0xff]
    %v542 = vld [vmem:[#allocation10 + $0x68] sm:$0xff]
    %v543 = vld [vmem:[#allocation10 + $0x70] sm:$0xff]
    %v544 = vld [vmem:[#allocation10 + $0x78] sm:$0xff]
    %v545 = vld [vmem:[%s6] sm:$0x1]
    %v547 = vlaneseq
    %v548 = vshrl.u32 %v547, 7
    %v549 = vsub.s32 0, %v548
    %v550 = vrot.slane %v545, %v549
    %552 = vmatprep.subr.mxu0 0.0
    %553 = vmatpush1.msra.mxu0 %v529
    %554 = vmatprep.subr.mxu0 0.0
    %555 = vmatpush1.msra.mxu0 %v530
    %556 = vmatprep.subr.mxu0 0.0
    %557 = vmatpush1.msra.mxu0 %v531
    %558 = vmatprep.subr.mxu0 0.0
    %559 = vmatpush1.msra.mxu0 %v532
    %560 = vmatprep.subr.mxu0 0.0
    %561 = vmatpush1.msra.mxu0 %v533
    %562 = vmatprep.subr.mxu0 0.0
    %563 = vmatpush1.msra.mxu0 %v534
    %564 = vmatprep.subr.mxu0 0.0
    %565 = vmatpush1.msra.mxu0 %v535
    %566 = vmatprep.subr.mxu0 0.0
    %567 = vmatpush1.msra.mxu0 %v536
    %568 = vmatprep.subr.mxu0 0.0
    %569 = vmatpush1.msra.mxu0 %v537
    %570 = vmatprep.subr.mxu0 0.0
    %571 = vmatpush1.msra.mxu0 %v538
    %572 = vmatprep.subr.mxu0 0.0
    %573 = vmatpush1.msra.mxu0 %v539
    %574 = vmatprep.subr.mxu0 0.0
    %575 = vmatpush1.msra.mxu0 %v540
    %576 = vmatprep.subr.mxu0 0.0
    %577 = vmatpush1.msra.mxu0 %v541
    %578 = vmatprep.subr.mxu0 0.0
    %579 = vmatpush1.msra.mxu0 %v542
    %580 = vmatprep.subr.mxu0 0.0
    %581 = vmatpush1.msra.mxu0 %v543
    %582 = vmatprep.subr.mxu0 0.0
    %583 = vmatpush1.msra.mxu0 %v544
    %584 = vmatprep.subr.mxu0 0.0
    %585 = vmatpush1.msra.mxu0 0.0
    %586 = vmatprep.subr.mxu0 0.0
    %587 = vmatpush1.msra.mxu0 0.0
    %588 = vmatprep.subr.mxu0 0.0
    %589 = vmatpush1.msra.mxu0 0.0
    %590 = vmatprep.subr.mxu0 0.0
    %591 = vmatpush1.msra.mxu0 0.0
    %592 = vmatprep.subr.mxu0 0.0
    %593 = vmatpush1.msra.mxu0 0.0
    %594 = vmatprep.subr.mxu0 0.0
    %595 = vmatpush1.msra.mxu0 0.0
    %596 = vmatprep.subr.mxu0 0.0
    %597 = vmatpush1.msra.mxu0 0.0
    %598 = vmatprep.subr.mxu0 0.0
    %599 = vmatpush1.msra.mxu0 0.0
    %600 = vmatprep.subr.mxu0 0.0
    %601 = vmatpush1.msra.mxu0 0.0
    %602 = vmatprep.subr.mxu0 0.0
    %603 = vmatpush1.msra.mxu0 0.0
    %604 = vmatprep.subr.mxu0 0.0
    %605 = vmatpush1.msra.mxu0 0.0
    %606 = vmatprep.subr.mxu0 0.0
    %607 = vmatpush1.msra.mxu0 0.0
    %608 = vmatprep.subr.mxu0 0.0
    %609 = vmatpush1.msra.mxu0 0.0
    %610 = vmatprep.subr.mxu0 0.0
    %611 = vmatpush1.msra.mxu0 0.0
    %612 = vmatprep.subr.mxu0 0.0
    %613 = vmatpush1.msra.mxu0 0.0
    %614 = vmatprep.subr.mxu0 0.0
    %615 = vmatpush1.msra.mxu0 0.0
    %616 = vmatprep.mubr.f32.mxu0 0.0
    %617 = vmatmul.mubr.f32.gmra.mrb[0].mxu0 %v521
    %v618 = vpop.f32.mrb[0].mxu0
    %v619 = vadd.f32 %v550, %v618
    %v620 = vpop.f32.mrb[0].mxu0
    %621 = vmatprep.mubr.f32.mxu0 0.0
    %622 = vmatmul.mubr.f32.gmra.mrb[0].mxu0 %v522
    %v623 = vpop.f32.mrb[0].mxu0
    %v624 = vadd.f32 %v550, %v623
    %v625 = vpop.f32.mrb[0].mxu0
    %626 = vmatprep.mubr.f32.mxu0 0.0
    %627 = vmatmul.mubr.f32.gmra.mrb[0].mxu0 %v523
    %v628 = vpop.f32.mrb[0].mxu0
    %v629 = vadd.f32 %v550, %v628
    %v630 = vpop.f32.mrb[0].mxu0
    %631 = vmatprep.mubr.f32.mxu0 0.0
    %632 = vmatmul.mubr.f32.gmra.mrb[0].mxu0 %v524
    %v633 = vpop.f32.mrb[0].mxu0
    %v634 = vadd.f32 %v550, %v633
    %v635 = vpop.f32.mrb[0].mxu0
    %636 = vmatprep.mubr.f32.mxu0 0.0
    %637 = vmatmul.mubr.f32.gmra.mrb[0].mxu0 %v525
    %v638 = vpop.f32.mrb[0].mxu0
    %v639 = vadd.f32 %v550, %v638
    %v640 = vpop.f32.mrb[0].mxu0
    %641 = vmatprep.mubr.f32.mxu0 0.0
    %642 = vmatmul.mubr.f32.gmra.mrb[0].mxu0 %v526
    %v643 = vpop.f32.mrb[0].mxu0
    %v644 = vadd.f32 %v550, %v643
    %v645 = vpop.f32.mrb[0].mxu0
    %646 = vmatprep.mubr.f32.mxu0 0.0
    %647 = vmatmul.mubr.f32.gmra.mrb[0].mxu0 %v527
    %v648 = vpop.f32.mrb[0].mxu0
    %v649 = vadd.f32 %v550, %v648
    %v650 = vpop.f32.mrb[0].mxu0
    %651 = vmatprep.mubr.f32.mxu0 0.0
    %652 = vmatmul.mubr.f32.gmra.mrb[0].mxu0 %v528
    %v653 = vpop.f32.mrb[0].mxu0
    %v654 = vadd.f32 %v550, %v653
    %v655 = vpop.f32.mrb[0].mxu0
    %656 = vdwg.mxu0
    %v657 = vmax.f32 %v619, 0.0
    %v658 = vmax.f32 %v624, 0.0
    %v659 = vmax.f32 %v629, 0.0
    %v660 = vmax.f32 %v634, 0.0
    %v661 = vmax.f32 %v639, 0.0
    %v662 = vmax.f32 %v644, 0.0
    %v663 = vmax.f32 %v649, 0.0
    %v664 = vmax.f32 %v654, 0.0
    %vm665 = vcmp.ne.f32.partialorder %v619, %v619
    %vm666 = vcmp.ne.f32.partialorder %v624, %v624
    %vm667 = vcmp.ne.f32.partialorder %v629, %v629
    %vm668 = vcmp.ne.f32.partialorder %v634, %v634
    %vm669 = vcmp.ne.f32.partialorder %v639, %v639
    %vm670 = vcmp.ne.f32.partialorder %v644, %v644
    %vm671 = vcmp.ne.f32.partialorder %v649, %v649
    %vm672 = vcmp.ne.f32.partialorder %v654, %v654
    %v673 = vadd.f32 %v619, 0.0
    %v674 = vadd.f32 %v624, 0.0
    %v675 = vadd.f32 %v629, 0.0
    %v676 = vadd.f32 %v634, 0.0
    %v677 = vadd.f32 %v639, 0.0
    %v678 = vadd.f32 %v644, 0.0
    %v679 = vadd.f32 %v649, 0.0
    %v680 = vadd.f32 %v654, 0.0
    %v681 = vand.u32 2147483647, %v619
    %v682 = vand.u32 2147483647, %v624
    %v683 = vand.u32 2147483647, %v629
    %v684 = vand.u32 2147483647, %v634
    %v685 = vand.u32 2147483647, %v639
    %v686 = vand.u32 2147483647, %v644
    %v687 = vand.u32 2147483647, %v649
    %v688 = vand.u32 2147483647, %v654
    %v689 = vsub.f32 0.0, %v681
    %v690 = vsub.f32 0.0, %v682
    %v691 = vsub.f32 0.0, %v683
    %v692 = vsub.f32 0.0, %v684
    %v693 = vsub.f32 0.0, %v685
    %v694 = vsub.f32 0.0, %v686
    %v695 = vsub.f32 0.0, %v687
    %v696 = vsub.f32 0.0, %v688
    %v697 = vmul.f32 %v689, 1.442695
    %v698 = vpow.pop %v697
    %v699 = vmul.f32 %v690, 1.442695
    %v700 = vpow.pop %v699
    %v701 = vmul.f32 %v691, 1.442695
    %v702 = vpow.pop %v701
    %v703 = vmul.f32 %v692, 1.442695
    %v704 = vpow.pop %v703
    %v705 = vmul.f32 %v693, 1.442695
    %v706 = vpow.pop %v705
    %v707 = vmul.f32 %v694, 1.442695
    %v708 = vpow.pop %v707
    %v709 = vmul.f32 %v695, 1.442695
    %v710 = vpow.pop %v709
    %v711 = vmul.f32 %v696, 1.442695
    %v712 = vpow.pop %v711
    %v713 = vadd.f32 %v698, 1.0
    %v714 = vlog2.pop %v713
    %v715 = vmul.f32 %v714, 0.6931472
    %v716 = vmul.f32 -0.5, %v698
    %v717 = vadd.f32 %v716, 1.0
    %v718 = vmul.f32 %v717, %v698
    %v719 = vand.u32 2147483647, %v698
    %vm720 = vcmp.lt.f32.partialorder %v719, 0.0004427343
    %v721 = vsel %vm720, %v718, %v715
    %v722 = vadd.f32 %v700, 1.0
    %v723 = vlog2.pop %v722
    %v724 = vmul.f32 %v723, 0.6931472
    %v725 = vmul.f32 -0.5, %v700
    %v726 = vadd.f32 %v725, 1.0
    %v727 = vmul.f32 %v726, %v700
    %v728 = vand.u32 2147483647, %v700
    %vm729 = vcmp.lt.f32.partialorder %v728, 0.0004427343
    %v730 = vsel %vm729, %v727, %v724
    %v731 = vadd.f32 %v702, 1.0
    %v732 = vlog2.pop %v731
    %v733 = vmul.f32 %v732, 0.6931472
    %v734 = vmul.f32 -0.5, %v702
    %v735 = vadd.f32 %v734, 1.0
    %v736 = vmul.f32 %v735, %v702
    %v737 = vand.u32 2147483647, %v702
    %vm738 = vcmp.lt.f32.partialorder %v737, 0.0004427343
    %v739 = vsel %vm738, %v736, %v733
    %v740 = vadd.f32 %v704, 1.0
    %v741 = vlog2.pop %v740
    %v742 = vmul.f32 %v741, 0.6931472
    %v743 = vmul.f32 -0.5, %v704
    %v744 = vadd.f32 %v743, 1.0
    %v745 = vmul.f32 %v744, %v704
    %v746 = vand.u32 2147483647, %v704
    %vm747 = vcmp.lt.f32.partialorder %v746, 0.0004427343
    %v748 = vsel %vm747, %v745, %v742
    %v749 = vadd.f32 %v706, 1.0
    %v750 = vlog2.pop %v749
    %v751 = vmul.f32 %v750, 0.6931472
    %v752 = vmul.f32 -0.5, %v706
    %v753 = vadd.f32 %v752, 1.0
    %v754 = vmul.f32 %v753, %v706
    %v755 = vand.u32 2147483647, %v706
    %vm756 = vcmp.lt.f32.partialorder %v755, 0.0004427343
    %v757 = vsel %vm756, %v754, %v751
    %v758 = vadd.f32 %v708, 1.0
    %v759 = vlog2.pop %v758
    %v760 = vmul.f32 %v759, 0.6931472
    %v761 = vmul.f32 -0.5, %v708
    %v762 = vadd.f32 %v761, 1.0
    %v763 = vmul.f32 %v762, %v708
    %v764 = vand.u32 2147483647, %v708
    %vm765 = vcmp.lt.f32.partialorder %v764, 0.0004427343
    %v766 = vsel %vm765, %v763, %v760
    %v767 = vadd.f32 %v710, 1.0
    %v768 = vlog2.pop %v767
    %v769 = vmul.f32 %v768, 0.6931472
    %v770 = vmul.f32 -0.5, %v710
    %v771 = vadd.f32 %v770, 1.0
    %v772 = vmul.f32 %v771, %v710
    %v773 = vand.u32 2147483647, %v710
    %vm774 = vcmp.lt.f32.partialorder %v773, 0.0004427343
    %v775 = vsel %vm774, %v772, %v769
    %v776 = vadd.f32 %v712, 1.0
    %v777 = vlog2.pop %v776
    %v778 = vmul.f32 %v777, 0.6931472
    %v779 = vmul.f32 -0.5, %v712
    %v780 = vadd.f32 %v779, 1.0
    %v781 = vmul.f32 %v780, %v712
    %v782 = vand.u32 2147483647, %v712
    %vm783 = vcmp.lt.f32.partialorder %v782, 0.0004427343
    %v784 = vsel %vm783, %v781, %v778
    %v785 = vadd.f32 %v657, %v721
    %v786 = vadd.f32 %v658, %v730
    %v787 = vadd.f32 %v659, %v739
    %v788 = vadd.f32 %v660, %v748
    %v789 = vadd.f32 %v661, %v757
    %v790 = vadd.f32 %v662, %v766
    %v791 = vadd.f32 %v663, %v775
    %v792 = vadd.f32 %v664, %v784
    %v793 = vsel %vm665, %v673, %v785
    %v794 = vsel %vm666, %v674, %v786
    %v795 = vsel %vm667, %v675, %v787
    %v796 = vsel %vm668, %v676, %v788
    %v797 = vsel %vm669, %v677, %v789
    %v798 = vsel %vm670, %v678, %v790
    %v799 = vsel %vm671, %v679, %v791
    %v800 = vsel %vm672, %v680, %v792
    %v801 = vsub.f32 %v793, 0.6931472
    %v802 = vsub.f32 %v794, 0.6931472
    %v803 = vsub.f32 %v795, 0.6931472
    %v804 = vsub.f32 %v796, 0.6931472
    %v805 = vsub.f32 %v797, 0.6931472
    %v806 = vsub.f32 %v798, 0.6931472
    %v807 = vsub.f32 %v799, 0.6931472
    %v808 = vsub.f32 %v800, 0.6931472
    %v809 = vld [vmem:[#allocation5] sm:$0xff]
    %v810 = vld [vmem:[#allocation5 + $0x8] sm:$0xff]
    %v811 = vld [vmem:[#allocation5 + $0x10] sm:$0xff]
    %v812 = vld [vmem:[#allocation5 + $0x18] sm:$0xff]
    %v813 = vld [vmem:[#allocation5 + $0x20] sm:$0xff]
    %v814 = vld [vmem:[#allocation5 + $0x28] sm:$0xff]
    %v815 = vld [vmem:[#allocation5 + $0x30] sm:$0xff]
    %v816 = vld [vmem:[#allocation5 + $0x38] sm:$0xff]
    %v817 = vadd.f32 %v809, %v801
    %v818 = vadd.f32 %v810, %v802
    %v819 = vadd.f32 %v811, %v803
    %v820 = vadd.f32 %v812, %v804
    %v821 = vadd.f32 %v813, %v805
    %v822 = vadd.f32 %v814, %v806
    %v823 = vadd.f32 %v815, %v807
    %v824 = vadd.f32 %v816, %v808
    %825 = vst [vmem:[#allocation11] sm:$0xff] %v817
    %826 = vst [vmem:[#allocation11 + $0x8] sm:$0xff] %v818
    %827 = vst [vmem:[#allocation11 + $0x10] sm:$0xff] %v819
    %828 = vst [vmem:[#allocation11 + $0x18] sm:$0xff] %v820
    %829 = vst [vmem:[#allocation11 + $0x20] sm:$0xff] %v821
    %830 = vst [vmem:[#allocation11 + $0x28] sm:$0xff] %v822
    %831 = vst [vmem:[#allocation11 + $0x30] sm:$0xff] %v823
    %832 = vst [vmem:[#allocation11 + $0x38] sm:$0xff] %v824
    // Predicated region
    $region50: #{tpu_custom_call.1} parent=1 // pred_check
      _
    $region51: #{tpu_custom_call.1} parent=1 // pred_check_branch
      %834 = sbr.rel (0) target = $region53
    $region52: #{tpu_custom_call.1} parent=1 // pred_region
      %s836 = ssub.s32 1024, 1024
      %837 = vsyncadd [#allocation4], %s836
      %s838 = sshll.u32 [#allocation11], 4
      %s839 = int_to_ptr.vmem [resolvable:$true] %s838
      %844 = dma.vmem_to_hbm [thread:$0]  %s839, 1024, %s7, [#allocation4], 128, 128, 8
    $region53: #{tpu_custom_call.1} parent=1 // pred_fallthru
      _
    // Predicated region
    $region54: #{tpu_custom_call.1} parent=1 // pred_check
      _
    $region55: #{tpu_custom_call.1} parent=1 // pred_check_branch
      %846 = sbr.rel (0) target = $region57
    $region56: #{tpu_custom_call.1} parent=1 // pred_region
      %847 = dma.done [#allocation4], 1024
    $region57: #{tpu_custom_call.1} parent=1 // pred_fallthru
      _
    %848 = vsyncpa [#allocation3], 1
    %849 = vsyncpa [#allocation6], 1
    %850 = vsyncpa [#allocation9], 1
    %851 = vsyncpa [#allocation4], 1

</llo_original>
